<compile_context>
chip_gen: v6e
topology: v6e:2x2x1
jax: 0.10.0
libtpu: 0.0.40
codegen_flags: <defaults>
</compile_context>

<pallas_src>
import functools

import jax
import jax.numpy as jnp
from jax.experimental import pallas as pl
from jax.experimental.pallas import tpu as pltpu


def _bilinear_kernel(x_ref, y_ref, wT_ref, b_ref, o_ref, *, class_num):
    """One batch tile.

    x_ref  : (bm, x_size)
    y_ref  : (bm, y_size)
    wT_ref : (class_num, y_size, x_size)   -- W_c^T per class (full array, resident)
    b_ref  : (class_num, 1, x_size)        -- per-class bias
    o_ref  : (bm, class_num)
    """
    x = x_ref[...].astype(jnp.float32)
    y = y_ref[...].astype(jnp.float32)

    cols = []
    for c in range(class_num):  # class_num is small; unrolled at trace time
        # (bm, y_size) @ (y_size, x_size) -> (bm, x_size)   [MXU]
        wy_c = jnp.dot(y, wT_ref[c].astype(jnp.float32),
                       preferred_element_type=jnp.float32)
        wy_c = wy_c + b_ref[c].astype(jnp.float32)            # + (1, x_size)
        # row-wise dot with x: (bm, 1)                        [VPU + XLU reduce]
        cols.append(jnp.sum(x * wy_c, axis=-1, keepdims=True))

    out = cols[0] if class_num == 1 else jnp.concatenate(cols, axis=-1)
    o_ref[...] = out.astype(o_ref.dtype)


def _round_up(n, m):
    return (n + m - 1) // m * m


def _pick_block_batch(batch, x_size, y_size, class_num,
                      target=512, budget_bytes=12 * 1024 * 1024):
    """Largest batch tile (multiple of 8, <= target) whose double-buffered VMEM
    footprint stays under `budget_bytes` (conservative for v7x's 64 MiB VMEM)."""
    bm = min(target, _round_up(batch, 8))
    bm = max(8, _round_up(bm, 8))
    # Weight/bias blocks are revisited every step but still double-buffered.
    fixed = 2 * (class_num * y_size * x_size + class_num * x_size) * 4
    per_row = 2 * (x_size + y_size + class_num) * 4
    while bm > 8 and fixed + bm * per_row > budget_bytes:
        bm = max(8, _round_up(bm // 2, 8))
    return bm


def bilinear_layer(x, y, weight, bias, class_num, *,
                   block_batch=512, vmem_limit_bytes=48 * 1024 * 1024):
    """
    x      : (B, x_size)
    y      : (B, y_size)
    weight : (class_num * x_size, y_size)   -- nn.Linear(y_size, x_size*class_num).weight
    bias   : (class_num * x_size,)
    Returns (B, class_num), squeezed to (B,) when class_num == 1 (matches squeeze(-1)).
    """
    B, x_size = x.shape
    By, y_size = y.shape
    assert B == By
    assert weight.shape == (class_num * x_size, y_size)
    assert bias.shape == (class_num * x_size,)

    # Per-class transposed weight: wT[c] = W_c^T with shape (y_size, x_size);
    # per-class bias as (class_num, 1, x_size) so the kernel indexes 2-D slabs.
    wT = jnp.transpose(weight.reshape(class_num, x_size, y_size), (0, 2, 1))
    b3 = bias.reshape(class_num, 1, x_size)

    # Large batch tiles amortize the ~0.35 us/step overhead; pad the batch to a
    # multiple of the tile instead of collapsing to one giant block.
    bm = _pick_block_batch(B, x_size, y_size, class_num, target=block_batch)
    B_pad = _round_up(B, bm)
    if B_pad != B:
        pad = B_pad - B
        x = jnp.pad(x, ((0, pad), (0, 0)))
        y = jnp.pad(y, ((0, pad), (0, 0)))

    grid = (B_pad // bm,)

    out = pl.pallas_call(
        functools.partial(_bilinear_kernel, class_num=class_num),
        out_shape=jax.ShapeDtypeStruct((B_pad, class_num), x.dtype),
        grid_spec=pltpu.PrefetchScalarGridSpec(
            num_scalar_prefetch=0,
            grid=grid,
            in_specs=[
                pl.BlockSpec((bm, x_size), lambda i: (i, 0)),
                pl.BlockSpec((bm, y_size), lambda i: (i, 0)),
                pl.BlockSpec((class_num, y_size, x_size), lambda i: (0, 0, 0)),
                pl.BlockSpec((class_num, 1, x_size), lambda i: (0, 0, 0)),
            ],
            out_specs=pl.BlockSpec((bm, class_num), lambda i: (i, 0)),
        ),
        compiler_params=pltpu.CompilerParams(
            # Batch-tile axis is independent -> shards across the 2 TCs on v7x,
            # measured no-op on single-TC v5e/v6e.
            dimension_semantics=("parallel",),
            # Raise the scoped VMEM limit above the 16/32 MiB defaults so the
            # larger tiles compile on v5e/v6e while staying below v7x physical.
            vmem_limit_bytes=vmem_limit_bytes,
        ),
    )(x, y, wT, b3)

    out = out[:B]
    if class_num == 1:
        out = jnp.squeeze(out, axis=-1)
    return out


def bilinear_ref(x, y, weight, bias, class_num):
    """Pure-JAX reference mirroring the PyTorch forward (eval mode)."""
    B, x_size = x.shape
    Wy = jnp.dot(y.astype(jnp.float32), weight.T.astype(jnp.float32),
                 preferred_element_type=jnp.float32) + bias.astype(jnp.float32)
    Wy = Wy.reshape(B, class_num, x_size)
    xWy = jnp.sum(x[:, None, :].astype(jnp.float32) * Wy, axis=2)
    xWy = xWy.astype(x.dtype)
    if class_num == 1:
        xWy = jnp.squeeze(xWy, axis=-1)
    return xWy


if __name__ == "__main__":
    # Small shapes consistent with the module: x = batch * h1, y = batch * h2.
    batch, x_size, y_size, class_num = 10, 32, 48, 3

    key = jax.random.PRNGKey(0)
    kx, ky, kw, kb = jax.random.split(key, 4)
    x = jax.random.normal(kx, (batch, x_size), dtype=jnp.float32)
    y = jax.random.normal(ky, (batch, y_size), dtype=jnp.float32)
    # Deterministic nn.Linear(y_size, x_size*class_num)-style parameters.
    bound = 1.0 / (y_size ** 0.5)
    weight = jax.random.uniform(kw, (class_num * x_size, y_size),
                                dtype=jnp.float32, minval=-bound, maxval=bound)
    bias = jax.random.uniform(kb, (class_num * x_size,),
                              dtype=jnp.float32, minval=-bound, maxval=bound)

    out = bilinear_layer(x, y, weight, bias, class_num)
    out = jax.block_until_ready(out)

    ref = bilinear_ref(x, y, weight, bias, class_num)
    assert out.shape == ref.shape, (out.shape, ref.shape)
    assert jnp.allclose(out, ref, atol=1e-4, rtol=1e-4), "mismatch vs reference"

    print("KERNEL_OK")
</pallas_src>

<mosaic_0001>
module attributes {stable_mosaic.version = 11 : i64} {
  func.func @_bilinear_kernel(%arg0: i32, %arg1: memref<16x32xf32, #tpu.memory_space<vmem>>, %arg2: memref<16x48xf32, #tpu.memory_space<vmem>>, %arg3: memref<3x48x32xf32, #tpu.memory_space<vmem>>, %arg4: memref<3x1x32xf32, #tpu.memory_space<vmem>>, %arg5: memref<16x3xf32, #tpu.memory_space<vmem>>) attributes {dimension_semantics = [#tpu.dimension_semantics<parallel>], iteration_bounds = array<i64: 1>, scalar_prefetch = 0 : i64, scratch_operands = 0 : i64, tpu.core_type = #tpu.core_type<tc>, window_params = [{transform_indices = @transform_0, window_bounds = array<i64: 16, 32>}, {transform_indices = @transform_1, window_bounds = array<i64: 16, 48>}, {pipeline_mode = #tpu.pipeline_mode<synchronous>, transform_indices = @transform_2, window_bounds = array<i64: 3, 48, 32>}, {pipeline_mode = #tpu.pipeline_mode<synchronous>, transform_indices = @transform_3, window_bounds = array<i64: 3, 1, 32>}, {transform_indices = @transform_4, window_bounds = array<i64: 16, 3>}]} {
    %c0 = arith.constant 0 : index
    %c0_0 = arith.constant 0 : index
    %0 = vector.load %arg1[%c0, %c0_0] : memref<16x32xf32, #tpu.memory_space<vmem>>, vector<16x32xf32>
    %c0_1 = arith.constant 0 : index
    %c0_2 = arith.constant 0 : index
    %1 = vector.load %arg2[%c0_1, %c0_2] : memref<16x48xf32, #tpu.memory_space<vmem>>, vector<16x48xf32>
    %c0_3 = arith.constant 0 : index
    %c0_4 = arith.constant 0 : index
    %c0_5 = arith.constant 0 : index
    %2 = vector.load %arg3[%c0_3, %c0_4, %c0_5] : memref<3x48x32xf32, #tpu.memory_space<vmem>>, vector<1x48x32xf32>
    %3 = vector.shape_cast %2 : vector<1x48x32xf32> to vector<48x32xf32>
    %cst = arith.constant dense<0.000000e+00> : vector<16x32xf32>
    %4 = tpu.matmul %1, %3, %cst {dimension_numbers = #tpu.dot_dimension_numbers<[1], [0], [0], [1], [0, 0, 1, 1], [], []>} : vector<16x48xf32>, vector<48x32xf32>, vector<16x32xf32> -> vector<16x32xf32>
    %c0_6 = arith.constant 0 : index
    %c0_7 = arith.constant 0 : index
    %c0_8 = arith.constant 0 : index
    %5 = vector.load %arg4[%c0_6, %c0_7, %c0_8] : memref<3x1x32xf32, #tpu.memory_space<vmem>>, vector<1x1x32xf32>
    %6 = vector.shape_cast %5 : vector<1x1x32xf32> to vector<1x32xf32>
    %7 = vector.broadcast %6 : vector<1x32xf32> to vector<16x32xf32>
    %8 = arith.addf %4, %7 : vector<16x32xf32>
    %9 = arith.mulf %0, %8 : vector<16x32xf32>
    %cst_9 = arith.constant dense<0.000000e+00> : vector<16xf32>
    %10 = vector.multi_reduction <add>, %9, %cst_9 [1] : vector<16x32xf32> to vector<16xf32>
    %11 = vector.shape_cast %10 : vector<16xf32> to vector<16x1xf32>
    %c1 = arith.constant 1 : index
    %c0_10 = arith.constant 0 : index
    %c0_11 = arith.constant 0 : index
    %12 = vector.load %arg3[%c1, %c0_10, %c0_11] : memref<3x48x32xf32, #tpu.memory_space<vmem>>, vector<1x48x32xf32>
    %13 = vector.shape_cast %12 : vector<1x48x32xf32> to vector<48x32xf32>
    %cst_12 = arith.constant dense<0.000000e+00> : vector<16x32xf32>
    %14 = tpu.matmul %1, %13, %cst_12 {dimension_numbers = #tpu.dot_dimension_numbers<[1], [0], [0], [1], [0, 0, 1, 1], [], []>} : vector<16x48xf32>, vector<48x32xf32>, vector<16x32xf32> -> vector<16x32xf32>
    %c1_13 = arith.constant 1 : index
    %c0_14 = arith.constant 0 : index
    %c0_15 = arith.constant 0 : index
    %15 = vector.load %arg4[%c1_13, %c0_14, %c0_15] : memref<3x1x32xf32, #tpu.memory_space<vmem>>, vector<1x1x32xf32>
    %16 = vector.shape_cast %15 : vector<1x1x32xf32> to vector<1x32xf32>
    %17 = vector.broadcast %16 : vector<1x32xf32> to vector<16x32xf32>
    %18 = arith.addf %14, %17 : vector<16x32xf32>
    %19 = arith.mulf %0, %18 : vector<16x32xf32>
    %cst_16 = arith.constant dense<0.000000e+00> : vector<16xf32>
    %20 = vector.multi_reduction <add>, %19, %cst_16 [1] : vector<16x32xf32> to vector<16xf32>
    %21 = vector.shape_cast %20 : vector<16xf32> to vector<16x1xf32>
    %c2 = arith.constant 2 : index
    %c0_17 = arith.constant 0 : index
    %c0_18 = arith.constant 0 : index
    %22 = vector.load %arg3[%c2, %c0_17, %c0_18] : memref<3x48x32xf32, #tpu.memory_space<vmem>>, vector<1x48x32xf32>
    %23 = vector.shape_cast %22 : vector<1x48x32xf32> to vector<48x32xf32>
    %cst_19 = arith.constant dense<0.000000e+00> : vector<16x32xf32>
    %24 = tpu.matmul %1, %23, %cst_19 {dimension_numbers = #tpu.dot_dimension_numbers<[1], [0], [0], [1], [0, 0, 1, 1], [], []>} : vector<16x48xf32>, vector<48x32xf32>, vector<16x32xf32> -> vector<16x32xf32>
    %c2_20 = arith.constant 2 : index
    %c0_21 = arith.constant 0 : index
    %c0_22 = arith.constant 0 : index
    %25 = vector.load %arg4[%c2_20, %c0_21, %c0_22] : memref<3x1x32xf32, #tpu.memory_space<vmem>>, vector<1x1x32xf32>
    %26 = vector.shape_cast %25 : vector<1x1x32xf32> to vector<1x32xf32>
    %27 = vector.broadcast %26 : vector<1x32xf32> to vector<16x32xf32>
    %28 = arith.addf %24, %27 : vector<16x32xf32>
    %29 = arith.mulf %0, %28 : vector<16x32xf32>
    %cst_23 = arith.constant dense<0.000000e+00> : vector<16xf32>
    %30 = vector.multi_reduction <add>, %29, %cst_23 [1] : vector<16x32xf32> to vector<16xf32>
    %31 = vector.shape_cast %30 : vector<16xf32> to vector<16x1xf32>
    %32 = tpu.concatenate %11, %21, %31 in 1 : vector<16x1xf32>, vector<16x1xf32>, vector<16x1xf32> -> vector<16x3xf32>
    %c0_24 = arith.constant 0 : index
    %c0_25 = arith.constant 0 : index
    %33 = vector.load %arg5[%c0_24, %c0_25] : memref<16x3xf32, #tpu.memory_space<vmem>>, vector<16x3xf32>
    tpu.vector_store %arg5[%c0_24, %c0_25], %32 {strides = array<i32>} : memref<16x3xf32, #tpu.memory_space<vmem>>, vector<16x3xf32>,
    return
  }
  func.func @transform_0(%arg0: i32) -> (i32, i32) {
    %c0_i32 = arith.constant 0 : i32
    %c0_i32_0 = arith.constant 0 : i32
    return %arg0, %c0_i32 : i32, i32
  }
  func.func @transform_1(%arg0: i32) -> (i32, i32) {
    %c0_i32 = arith.constant 0 : i32
    %c0_i32_0 = arith.constant 0 : i32
    return %arg0, %c0_i32 : i32, i32
  }
  func.func @transform_2(%arg0: i32) -> (i32, i32, i32) {
    %c0_i32 = arith.constant 0 : i32
    %c0_i32_0 = arith.constant 0 : i32
    %c0_i32_1 = arith.constant 0 : i32
    %c0_i32_2 = arith.constant 0 : i32
    return %c0_i32, %c0_i32_0, %c0_i32_1 : i32, i32, i32
  }
  func.func @transform_3(%arg0: i32) -> (i32, i32, i32) {
    %c0_i32 = arith.constant 0 : i32
    %c0_i32_0 = arith.constant 0 : i32
    %c0_i32_1 = arith.constant 0 : i32
    %c0_i32_2 = arith.constant 0 : i32
    return %c0_i32, %c0_i32_0, %c0_i32_1 : i32, i32, i32
  }
  func.func @transform_4(%arg0: i32) -> (i32, i32) {
    %c0_i32 = arith.constant 0 : i32
    %c0_i32_0 = arith.constant 0 : i32
    return %arg0, %c0_i32 : i32, i32
  }
}

</mosaic_0001>

<llo_original>
// kernel: tpu_custom_call.1
$region0: #{tpu_custom_call.1}
  #allocation0 [shape = 'u32[]', space=smem, size = 0x4, offset = 0x4, fixed_abs, tag = 'smem constant byte address 0x4 - core index']
  #allocation1 [shape = 'u32[144,128]{1,0:T(1,128)}', space=vmem, size = 0x12000, scoped, tag = 'internal scratch']
  %s0 = inlined_call_operand.vmem [shape: f32[16,32], index: 0, kind: input, shape index: {}]
  %s1 = inlined_call_operand.vmem [shape: f32[16,48], index: 1, kind: input, shape index: {}]
  %s2 = inlined_call_operand.vmem [shape: f32[3,48,32], index: 2, kind: input, shape index: {}]
  %s3 = inlined_call_operand.vmem [shape: f32[3,1,32], index: 3, kind: input, shape index: {}]
  %s4 = inlined_call_operand.vmem [shape: f32[16,3], index: 4, kind: output, shape index: {}]
  %s5 = sld [smem:[#allocation0]]
  $region26: #{tpu_custom_call.1} parent=0
    _
  %s7 = ssub.s32 1, %s5
  %s8 = scalar_select 0, %s7, %s5
  // Predicated region
  $region2: #{tpu_custom_call.1} parent=0 // pred_check
    _
  $region3: #{tpu_custom_call.1} parent=0 // pred_check_branch
    %10 = sbr.rel (0) target = $region5
  $region4: #{tpu_custom_call.1} parent=0 // pred_region
    _
  $region5: #{tpu_custom_call.1} parent=0 // pred_fallthru
    _
  // Predicated region
  $region6: #{tpu_custom_call.1} parent=0 // pred_check
    _
  $region7: #{tpu_custom_call.1} parent=0 // pred_check_branch
    %12 = sbr.rel (0) target = $region9
  $region8: #{tpu_custom_call.1} parent=0 // pred_region
    _
  $region9: #{tpu_custom_call.1} parent=0 // pred_fallthru
    _
  // Predicated region
  $region10: #{tpu_custom_call.1} parent=0 // pred_check
    _
  $region11: #{tpu_custom_call.1} parent=0 // pred_check_branch
    %14 = sbr.rel (0) target = $region13
  $region12: #{tpu_custom_call.1} parent=0 // pred_region
    _
  $region13: #{tpu_custom_call.1} parent=0 // pred_fallthru
    _
  // Predicated region
  $region14: #{tpu_custom_call.1} parent=0 // pred_check
    _
  $region15: #{tpu_custom_call.1} parent=0 // pred_check_branch
    %16 = sbr.rel (0) target = $region17
  $region16: #{tpu_custom_call.1} parent=0 // pred_region
    _
  $region17: #{tpu_custom_call.1} parent=0 // pred_fallthru
    _
  %v17 = vld [vmem:[%s0] sm:$0xff]
  %v18 = vld [vmem:[%s0 + $0x8] sm:$0xff]
  %v19 = vld [vmem:[%s1] sm:$0xff]
  %v20 = vld [vmem:[%s1 + $0x8] sm:$0xff]
  %v21 = vld [vmem:[%s2] sm:$0xff]
  %v22 = vld [vmem:[%s2 + $0x8] sm:$0xff]
  %v23 = vld [vmem:[%s2 + $0x10] sm:$0xff]
  %v24 = vld [vmem:[%s2 + $0x18] sm:$0xff]
  %v25 = vld [vmem:[%s2 + $0x20] sm:$0xff]
  %v26 = vld [vmem:[%s2 + $0x28] sm:$0xff]
  %v27 = vld [vmem:[%s3] sm:$0x1]
  %v29 = vlaneseq
  %v30 = vshrl.u32 %v29, 7
  %v31 = vsub.s32 0, %v30
  %v32 = vrot.slane %v27, %v31
  %vm34 = vcmask 392192
  %v36 = vsel %vm34, %v19, 0
  %v39 = vsel %vm34, %v20, 0
  %41 = vmatprep.subr.mxu0 0.0
  %42 = vmatpush1.msra.mxu0 0.0
  %43 = vmatprep.subr.mxu0 0.0
  %44 = vmatpush1.msra.mxu0 0.0
  %45 = vmatprep.subr.mxu0 0.0
  %46 = vmatpush1.msra.mxu0 0.0
  %47 = vmatprep.subr.mxu0 0.0
  %48 = vmatpush1.msra.mxu0 0.0
  %49 = vmatprep.subr.mxu0 0.0
  %50 = vmatpush1.msra.mxu0 0.0
  %51 = vmatprep.subr.mxu0 0.0
  %52 = vmatpush1.msra.mxu0 0.0
  %53 = vmatprep.subr.mxu0 0.0
  %54 = vmatpush1.msra.mxu0 0.0
  %55 = vmatprep.subr.mxu0 0.0
  %56 = vmatpush1.msra.mxu0 0.0
  %57 = vmatprep.subr.mxu0 0.0
  %58 = vmatpush1.msra.mxu0 0.0
  %59 = vmatprep.subr.mxu0 0.0
  %60 = vmatpush1.msra.mxu0 0.0
  %61 = vmatprep.subr.mxu0 0.0
  %62 = vmatpush1.msra.mxu0 %v26
  %63 = vmatprep.subr.mxu0 0.0
  %64 = vmatpush1.msra.mxu0 %v25
  %65 = vmatprep.subr.mxu0 0.0
  %66 = vmatpush1.msra.mxu0 %v24
  %67 = vmatprep.subr.mxu0 0.0
  %68 = vmatpush1.msra.mxu0 %v23
  %69 = vmatprep.subr.mxu0 0.0
  %70 = vmatpush1.msra.mxu0 %v22
  %71 = vmatprep.subr.mxu0 0.0
  %72 = vmatpush1.msra.mxu0 %v21
  %73 = vmatprep.subr.mxu0 0.0
  %74 = vmatpush2.msra.mxu0 0.0
  %75 = vmatprep.subr.mxu0 0.0
  %76 = vmatpush2.msra.mxu0 0.0
  %77 = vmatprep.subr.mxu0 0.0
  %78 = vmatpush2.msra.mxu0 0.0
  %79 = vmatprep.subr.mxu0 0.0
  %80 = vmatpush2.msra.mxu0 0.0
  %81 = vmatprep.subr.mxu0 0.0
  %82 = vmatpush2.msra.mxu0 0.0
  %83 = vmatprep.subr.mxu0 0.0
  %84 = vmatpush2.msra.mxu0 0.0
  %85 = vmatprep.subr.mxu0 0.0
  %86 = vmatpush2.msra.mxu0 0.0
  %87 = vmatprep.subr.mxu0 0.0
  %88 = vmatpush2.msra.mxu0 0.0
  %89 = vmatprep.subr.mxu0 0.0
  %90 = vmatpush2.msra.mxu0 0.0
  %91 = vmatprep.subr.mxu0 0.0
  %92 = vmatpush2.msra.mxu0 0.0
  %93 = vmatprep.subr.mxu0 0.0
  %94 = vmatpush2.msra.mxu0 0.0
  %95 = vmatprep.subr.mxu0 0.0
  %96 = vmatpush2.msra.mxu0 0.0
  %97 = vmatprep.subr.mxu0 0.0
  %98 = vmatpush2.msra.mxu0 0.0
  %99 = vmatprep.subr.mxu0 0.0
  %100 = vmatpush2.msra.mxu0 0.0
  %101 = vmatprep.subr.mxu0 0.0
  %102 = vmatpush2.msra.mxu0 0.0
  %103 = vmatprep.subr.mxu0 0.0
  %104 = vmatpush2.msra.mxu0 0.0
  %105 = vmatprep.mubr.f32.mxu0 0.0
  %106 = vmatmul.mubr.f32.gmra.mxu0 %v36
  %v107 = vpop.f32.mrf.mxu0
  %v108 = vadd.f32 %v32, %v107
  %v109 = vpop.f32.mrf.mxu0
  %110 = vmatprep.mubr.f32.mxu0 0.0
  %111 = vmatmul.mubr.f32.gmra.mxu0 %v39
  %v112 = vpop.f32.mrf.mxu0
  %v113 = vadd.f32 %v32, %v112
  %v114 = vpop.f32.mrf.mxu0
  %115 = vdwg.mxu0
  %v116 = vmul.f32 %v17, %v108
  %v117 = vmul.f32 %v18, %v113
  %vm118 = vcmask 261120
  %v119 = vsel %vm118, %v116, 0.0
  %120 = vadd.xlane.f32.xlu0 %v119
  %v121 = vpop.xlane.xlu0 %120
  %v122 = vsel %vm118, %v117, 0.0
  %123 = vadd.xlane.f32.xlu0 %v122
  %v124 = vpop.xlane.xlu0 %123
  %s125 = scalar_lea.vmem %s2, 48
  %v126 = vld [vmem:[%s125] sm:$0xff]
  %v127 = vld [vmem:[%s125 + $0x8] sm:$0xff]
  %v128 = vld [vmem:[%s125 + $0x10] sm:$0xff]
  %v129 = vld [vmem:[%s125 + $0x18] sm:$0xff]
  %v130 = vld [vmem:[%s125 + $0x20] sm:$0xff]
  %v131 = vld [vmem:[%s125 + $0x28] sm:$0xff]
  %s132 = scalar_lea.vmem %s3, 1
  %v133 = vld [vmem:[%s132] sm:$0x1]
  %v135 = vlaneseq
  %v136 = vshrl.u32 %v135, 7
  %v137 = vsub.s32 0, %v136
  %v138 = vrot.slane %v133, %v137
  %140 = vmatprep.subr.mxu0 0.0
  %141 = vmatpush1.msra.mxu0 0.0
  %142 = vmatprep.subr.mxu0 0.0
  %143 = vmatpush1.msra.mxu0 0.0
  %144 = vmatprep.subr.mxu0 0.0
  %145 = vmatpush1.msra.mxu0 0.0
  %146 = vmatprep.subr.mxu0 0.0
  %147 = vmatpush1.msra.mxu0 0.0
  %148 = vmatprep.subr.mxu0 0.0
  %149 = vmatpush1.msra.mxu0 0.0
  %150 = vmatprep.subr.mxu0 0.0
  %151 = vmatpush1.msra.mxu0 0.0
  %152 = vmatprep.subr.mxu0 0.0
  %153 = vmatpush1.msra.mxu0 0.0
  %154 = vmatprep.subr.mxu0 0.0
  %155 = vmatpush1.msra.mxu0 0.0
  %156 = vmatprep.subr.mxu0 0.0
  %157 = vmatpush1.msra.mxu0 0.0
  %158 = vmatprep.subr.mxu0 0.0
  %159 = vmatpush1.msra.mxu0 0.0
  %160 = vmatprep.subr.mxu0 0.0
  %161 = vmatpush1.msra.mxu0 %v131
  %162 = vmatprep.subr.mxu0 0.0
  %163 = vmatpush1.msra.mxu0 %v130
  %164 = vmatprep.subr.mxu0 0.0
  %165 = vmatpush1.msra.mxu0 %v129
  %166 = vmatprep.subr.mxu0 0.0
  %167 = vmatpush1.msra.mxu0 %v128
  %168 = vmatprep.subr.mxu0 0.0
  %169 = vmatpush1.msra.mxu0 %v127
  %170 = vmatprep.subr.mxu0 0.0
  %171 = vmatpush1.msra.mxu0 %v126
  %172 = vmatprep.subr.mxu0 0.0
  %173 = vmatpush2.msra.mxu0 0.0
  %174 = vmatprep.subr.mxu0 0.0
  %175 = vmatpush2.msra.mxu0 0.0
  %176 = vmatprep.subr.mxu0 0.0
  %177 = vmatpush2.msra.mxu0 0.0
  %178 = vmatprep.subr.mxu0 0.0
  %179 = vmatpush2.msra.mxu0 0.0
  %180 = vmatprep.subr.mxu0 0.0
  %181 = vmatpush2.msra.mxu0 0.0
  %182 = vmatprep.subr.mxu0 0.0
  %183 = vmatpush2.msra.mxu0 0.0
  %184 = vmatprep.subr.mxu0 0.0
  %185 = vmatpush2.msra.mxu0 0.0
  %186 = vmatprep.subr.mxu0 0.0
  %187 = vmatpush2.msra.mxu0 0.0
  %188 = vmatprep.subr.mxu0 0.0
  %189 = vmatpush2.msra.mxu0 0.0
  %190 = vmatprep.subr.mxu0 0.0
  %191 = vmatpush2.msra.mxu0 0.0
  %192 = vmatprep.subr.mxu0 0.0
  %193 = vmatpush2.msra.mxu0 0.0
  %194 = vmatprep.subr.mxu0 0.0
  %195 = vmatpush2.msra.mxu0 0.0
  %196 = vmatprep.subr.mxu0 0.0
  %197 = vmatpush2.msra.mxu0 0.0
  %198 = vmatprep.subr.mxu0 0.0
  %199 = vmatpush2.msra.mxu0 0.0
  %200 = vmatprep.subr.mxu0 0.0
  %201 = vmatpush2.msra.mxu0 0.0
  %202 = vmatprep.subr.mxu0 0.0
  %203 = vmatpush2.msra.mxu0 0.0
  %204 = vmatprep.mubr.f32.mxu0 0.0
  %205 = vmatmul.mubr.f32.gmra.mxu0 %v36
  %v206 = vpop.f32.mrf.mxu0
  %v207 = vadd.f32 %v138, %v206
  %v208 = vpop.f32.mrf.mxu0
  %209 = vmatprep.mubr.f32.mxu0 0.0
  %210 = vmatmul.mubr.f32.gmra.mxu0 %v39
  %v211 = vpop.f32.mrf.mxu0
  %v212 = vadd.f32 %v138, %v211
  %v213 = vpop.f32.mrf.mxu0
  %214 = vdwg.mxu0
  %v215 = vmul.f32 %v17, %v207
  %v216 = vmul.f32 %v18, %v212
  %v217 = vsel %vm118, %v215, 0.0
  %218 = vadd.xlane.f32.xlu0 %v217
  %v219 = vpop.xlane.xlu0 %218
  %v220 = vsel %vm118, %v216, 0.0
  %221 = vadd.xlane.f32.xlu0 %v220
  %v222 = vpop.xlane.xlu0 %221
  %s223 = scalar_lea.vmem %s2, 96
  %v224 = vld [vmem:[%s223] sm:$0xff]
  %v225 = vld [vmem:[%s223 + $0x8] sm:$0xff]
  %v226 = vld [vmem:[%s223 + $0x10] sm:$0xff]
  %v227 = vld [vmem:[%s223 + $0x18] sm:$0xff]
  %v228 = vld [vmem:[%s223 + $0x20] sm:$0xff]
  %v229 = vld [vmem:[%s223 + $0x28] sm:$0xff]
  %s230 = scalar_lea.vmem %s3, 2
  %v231 = vld [vmem:[%s230] sm:$0x1]
  %v233 = vlaneseq
  %v234 = vshrl.u32 %v233, 7
  %v235 = vsub.s32 0, %v234
  %v236 = vrot.slane %v231, %v235
  %238 = vmatprep.subr.mxu0 0.0
  %239 = vmatpush1.msra.mxu0 0.0
  %240 = vmatprep.subr.mxu0 0.0
  %241 = vmatpush1.msra.mxu0 0.0
  %242 = vmatprep.subr.mxu0 0.0
  %243 = vmatpush1.msra.mxu0 0.0
  %244 = vmatprep.subr.mxu0 0.0
  %245 = vmatpush1.msra.mxu0 0.0
  %246 = vmatprep.subr.mxu0 0.0
  %247 = vmatpush1.msra.mxu0 0.0
  %248 = vmatprep.subr.mxu0 0.0
  %249 = vmatpush1.msra.mxu0 0.0
  %250 = vmatprep.subr.mxu0 0.0
  %251 = vmatpush1.msra.mxu0 0.0
  %252 = vmatprep.subr.mxu0 0.0
  %253 = vmatpush1.msra.mxu0 0.0
  %254 = vmatprep.subr.mxu0 0.0
  %255 = vmatpush1.msra.mxu0 0.0
  %256 = vmatprep.subr.mxu0 0.0
  %257 = vmatpush1.msra.mxu0 0.0
  %258 = vmatprep.subr.mxu0 0.0
  %259 = vmatpush1.msra.mxu0 %v229
  %260 = vmatprep.subr.mxu0 0.0
  %261 = vmatpush1.msra.mxu0 %v228
  %262 = vmatprep.subr.mxu0 0.0
  %263 = vmatpush1.msra.mxu0 %v227
  %264 = vmatprep.subr.mxu0 0.0
  %265 = vmatpush1.msra.mxu0 %v226
  %266 = vmatprep.subr.mxu0 0.0
  %267 = vmatpush1.msra.mxu0 %v225
  %268 = vmatprep.subr.mxu0 0.0
  %269 = vmatpush1.msra.mxu0 %v224
  %270 = vmatprep.subr.mxu0 0.0
  %271 = vmatpush2.msra.mxu0 0.0
  %272 = vmatprep.subr.mxu0 0.0
  %273 = vmatpush2.msra.mxu0 0.0
  %274 = vmatprep.subr.mxu0 0.0
  %275 = vmatpush2.msra.mxu0 0.0
  %276 = vmatprep.subr.mxu0 0.0
  %277 = vmatpush2.msra.mxu0 0.0
  %278 = vmatprep.subr.mxu0 0.0
  %279 = vmatpush2.msra.mxu0 0.0
  %280 = vmatprep.subr.mxu0 0.0
  %281 = vmatpush2.msra.mxu0 0.0
  %282 = vmatprep.subr.mxu0 0.0
  %283 = vmatpush2.msra.mxu0 0.0
  %284 = vmatprep.subr.mxu0 0.0
  %285 = vmatpush2.msra.mxu0 0.0
  %286 = vmatprep.subr.mxu0 0.0
  %287 = vmatpush2.msra.mxu0 0.0
  %288 = vmatprep.subr.mxu0 0.0
  %289 = vmatpush2.msra.mxu0 0.0
  %290 = vmatprep.subr.mxu0 0.0
  %291 = vmatpush2.msra.mxu0 0.0
  %292 = vmatprep.subr.mxu0 0.0
  %293 = vmatpush2.msra.mxu0 0.0
  %294 = vmatprep.subr.mxu0 0.0
  %295 = vmatpush2.msra.mxu0 0.0
  %296 = vmatprep.subr.mxu0 0.0
  %297 = vmatpush2.msra.mxu0 0.0
  %298 = vmatprep.subr.mxu0 0.0
  %299 = vmatpush2.msra.mxu0 0.0
  %300 = vmatprep.subr.mxu0 0.0
  %301 = vmatpush2.msra.mxu0 0.0
  %302 = vmatprep.mubr.f32.mxu0 0.0
  %303 = vmatmul.mubr.f32.gmra.mxu0 %v36
  %v304 = vpop.f32.mrf.mxu0
  %v305 = vadd.f32 %v236, %v304
  %v306 = vpop.f32.mrf.mxu0
  %307 = vmatprep.mubr.f32.mxu0 0.0
  %308 = vmatmul.mubr.f32.gmra.mxu0 %v39
  %v309 = vpop.f32.mrf.mxu0
  %v310 = vadd.f32 %v236, %v309
  %v311 = vpop.f32.mrf.mxu0
  %312 = vdwg.mxu0
  %v313 = vmul.f32 %v17, %v305
  %v314 = vmul.f32 %v18, %v310
  %v315 = vsel %vm118, %v313, 0.0
  %316 = vadd.xlane.f32.xlu0 %v315
  %v317 = vpop.xlane.xlu0 %316
  %v318 = vsel %vm118, %v314, 0.0
  %319 = vadd.xlane.f32.xlu0 %v318
  %v320 = vpop.xlane.xlu0 %319
  %vm321 = vcmask 7168
  %v322 = vsel %vm321, %v121, %v219
  %v323 = vsel %vm321, %v124, %v222
  %vm324 = vcmask 15360
  %v325 = vsel %vm324, %v322, %v317
  %v326 = vsel %vm324, %v323, %v320
  %vm327 = vcmask 23552
  %328 = vst.msk [vmem:[%s4] sm:$0xff] %vm327, %v325
  %329 = vst.msk [vmem:[%s4 + $0x8] sm:$0xff] %vm327, %v326
  // Predicated region
  $region18: #{tpu_custom_call.1} parent=0 // pred_check
    _
  $region19: #{tpu_custom_call.1} parent=0 // pred_check_branch
    %331 = sbr.rel (0) target = $region21
  $region20: #{tpu_custom_call.1} parent=0 // pred_region
    _
  $region21: #{tpu_custom_call.1} parent=0 // pred_fallthru
    _
  // Predicated region
  $region22: #{tpu_custom_call.1} parent=0 // pred_check
    _
  $region23: #{tpu_custom_call.1} parent=0 // pred_check_branch
    %333 = sbr.rel (0) target = $region25
  $region24: #{tpu_custom_call.1} parent=0 // pred_region
    _
  $region25: #{tpu_custom_call.1} parent=0 // pred_fallthru
    _

</llo_original>
